<compile_context>
chip_gen: v5e
topology: v5e:2x2
jax: 0.10.0
libtpu: 0.0.40
codegen_flags: <defaults>
</compile_context>

<pallas_src>
import math
import jax
import jax.numpy as jnp
from jax import lax
from jax.experimental import pallas as pl
from jax.experimental.pallas import tpu as pltpu


def _round_up(x, m):
    return ((x + m - 1) // m) * m


def _cdiv(a, b):
    return -(-a // b)


def _transform_kernel(x_ref, w_ref, b_ref, gamma_ref, beta_ref, o_ref):
    """One row tile: dense (MXU, native-dtype operands, f32 accum) -> erf-GELU
    -> single-sweep LayerNorm with rsqrt and a folded affine; epilogue in f32."""
    x = x_ref[...]                      # (TM, H), native dtype (bf16 or f32)
    w = w_ref[...]                      # (H, H),  native dtype, (in, out) layout

    # Dense: MXU matmul with f32 accumulation; no operand upcast.
    h = jnp.dot(x, w, preferred_element_type=jnp.float32)
    h = h + b_ref[...].astype(jnp.float32)

    # erf-GELU: x * 0.5 * (1 + erf(x / sqrt(2)))  (matches the PyTorch module;
    # tanh-approx would be cheaper on the EUP but changes numerics).
    h = h * (0.5 * (1.0 + lax.erf(h * (1.0 / math.sqrt(2.0)))))

    # TF-style LayerNorm, fused single sweep:
    #   var = E[h^2] - E[h]^2; normalize with rsqrt (EUP) instead of a divide.
    inv_h = 1.0 / h.shape[-1]
    m1 = jnp.sum(h, axis=-1, keepdims=True) * inv_h
    m2 = jnp.sum(h * h, axis=-1, keepdims=True) * inv_h
    inv_std = lax.rsqrt(m2 - m1 * m1 + 1e-12)

    # Folded LN affine: out = h * (inv_std*gamma) + (beta - m1*inv_std*gamma)
    gamma = gamma_ref[...].astype(jnp.float32)
    beta = beta_ref[...].astype(jnp.float32)
    scale = inv_std * gamma
    shift = beta - m1 * scale
    o_ref[...] = (h * scale + shift).astype(o_ref.dtype)


def _tpu_generation_params():
    """Return (vmem_budget_bytes, vmem_limit_bytes, tensorcores_per_chip)."""
    vmem_cap = None
    try:
        vmem_cap = int(pltpu.get_tpu_info().vmem_capacity_bytes)
    except Exception:
        vmem_cap = None
    kind = ""
    try:
        kind = jax.devices()[0].device_kind.lower()
    except Exception:
        pass
    if vmem_cap is None:
        # v7x: 64 MiB per TC; v5e/v6e: 128 MiB.
        vmem_cap = 64 * 1024 * 1024 if "v7" in kind else 128 * 1024 * 1024
    num_cores = 2 if "v7" in kind else 1
    # Leave headroom for Mosaic-internal scratch; >100 MiB buys nothing here.
    budget = max(32 * 1024 * 1024,
                 min(vmem_cap - 16 * 1024 * 1024, 100 * 1024 * 1024))
    return budget, budget, num_cores


def _choose_tile_m(M, H, elt_bytes, *, desired, vmem_budget, num_cores):
    """MXU-friendly row tile that fits the generation-specific VMEM budget."""
    mult = 16 if elt_bytes == 2 else 8          # bf16 vregs pack (16, 128)
    tm = _round_up(max(1, min(desired, M)), mult)

    def vmem_bytes(t):
        weight = H * H * elt_bytes              # single-buffered resident weight
        io = 2 * (2 * t * H * elt_bytes)        # double-buffered x-in + out
        scratch = 4 * t * H * 4                 # f32 epilogue intermediates
        vecs = 4 * H * 4                        # bias / gamma / beta
        return weight + io + scratch + vecs

    while tm > mult and vmem_bytes(tm) > vmem_budget:
        tm -= mult

    steps = _cdiv(M, tm)
    # Keep at least 2 grid steps when M allows (pipeline overlap / both cores).
    if steps < 2 and M > mult:
        tm = _round_up(_cdiv(M, 2), mult)
        steps = _cdiv(M, tm)
    # 2-TC chips (v7x): prefer an even step count so no core idles at the end.
    if num_cores > 1 and steps > 1 and steps % num_cores != 0:
        target = _round_up(steps, num_cores)
        cand = _round_up(_cdiv(M, target), mult)   # cand <= tm, so VMEM still ok
        if _cdiv(M, cand) % num_cores == 0:
            tm = cand
    return tm


def bert_prediction_head_transform(hidden_states, dense_wT, dense_b,
                                   ln_weight, ln_bias, *, tile_m=None):
    """hidden_states: [B, S, H].
    dense_wT: [H_in, H_out] -- the nn.Linear weight PRE-transposed once at
    parameter-setup time (avoids an H*H HBM transpose on every forward)."""
    B, S, H = hidden_states.shape
    M = B * S
    elt_bytes = jnp.dtype(hidden_states.dtype).itemsize

    vmem_budget, vmem_limit, num_cores = _tpu_generation_params()
    if tile_m is None:
        tile_m = _choose_tile_m(M, H, elt_bytes, desired=1024,
                                vmem_budget=vmem_budget, num_cores=num_cores)

    # Pad the row axis to a multiple of tile_m; padded rows are dropped below.
    Mp = _cdiv(M, tile_m) * tile_m
    x2d = hidden_states.reshape(M, H)
    if Mp != M:
        x2d = jnp.pad(x2d, ((0, Mp - M), (0, 0)))

    b2d = dense_b.reshape(1, H)
    g2d = ln_weight.reshape(1, H)
    beta2d = ln_bias.reshape(1, H)

    cost = pl.CostEstimate(
        flops=2 * Mp * H * H + 12 * Mp * H,
        transcendentals=Mp * H + Mp,
        bytes_accessed=2 * Mp * H * elt_bytes + H * H * elt_bytes + 3 * H * 4,
    )

    def build_and_run(resident_mode):
        call = pl.pallas_call(
            _transform_kernel,
            out_shape=jax.ShapeDtypeStruct((Mp, H), hidden_states.dtype),
            grid_spec=pltpu.PrefetchScalarGridSpec(
                num_scalar_prefetch=0,
                grid=(Mp // tile_m,),
                in_specs=[
                    # x row tile: normal double-buffered pipeline.
                    pl.BlockSpec((tile_m, H), lambda i: (i, 0)),
                    # Resident operands (constant index_map): single-buffered.
                    pl.BlockSpec((H, H), lambda i: (0, 0),
                                 pipeline_mode=resident_mode),
                    pl.BlockSpec((1, H), lambda i: (0, 0),
                                 pipeline_mode=resident_mode),
                    pl.BlockSpec((1, H), lambda i: (0, 0),
                                 pipeline_mode=resident_mode),
                    pl.BlockSpec((1, H), lambda i: (0, 0),
                                 pipeline_mode=resident_mode),
                ],
                out_specs=pl.BlockSpec((tile_m, H), lambda i: (i, 0)),
            ),
            compiler_params=pltpu.CompilerParams(
                dimension_semantics=("parallel",),
                vmem_limit_bytes=vmem_limit,
            ),
            cost_estimate=cost,
        )
        return call(x2d, dense_wT, b2d, g2d, beta2d)

    try:
        out2d = build_and_run(pl.Buffered(1))
    except Exception:
        # Fallback: identical kernel with default (double) buffering, in case
        # buffer_count=1 is rejected by the installed Pallas version.
        out2d = build_and_run(None)

    if Mp != M:
        out2d = out2d[:M]
    return out2d.reshape(B, S, H)


def _reference(hidden_states, dense_w, dense_b, ln_weight, ln_bias):
    x = hidden_states.astype(jnp.float32)
    h = jnp.einsum("bsh,oh->bso", x, dense_w.astype(jnp.float32)) + dense_b
    h = h * 0.5 * (1.0 + lax.erf(h / jnp.sqrt(2.0)))
    u = jnp.mean(h, axis=-1, keepdims=True)
    s = jnp.mean((h - u) ** 2, axis=-1, keepdims=True)
    h = (h - u) / jnp.sqrt(s + 1e-12)
    return ln_weight * h + ln_bias


if __name__ == "__main__":
    batch, seq, hidden = 2, 8, 32

    key = jax.random.PRNGKey(0)
    k_x, k_w, k_b = jax.random.split(key, 3)

    x = jax.random.normal(k_x, (batch, seq, hidden), dtype=jnp.float32)
    # nn.Linear(hidden, hidden): weight [out, in], bias [out]
    dense_w = jax.random.normal(k_w, (hidden, hidden), dtype=jnp.float32) * 0.02
    dense_b = jax.random.normal(k_b, (hidden,), dtype=jnp.float32) * 0.02
    # BertLayerNorm init: weight=ones, bias=zeros
    ln_weight = jnp.ones((hidden,), dtype=jnp.float32)
    ln_bias = jnp.zeros((hidden,), dtype=jnp.float32)

    # One-time parameter setup: pre-transpose the Linear weight to (H_in, H_out).
    dense_wT = jnp.asarray(dense_w.T)

    out = bert_prediction_head_transform(x, dense_wT, dense_b, ln_weight, ln_bias)
    out = jax.block_until_ready(out)

    ref = _reference(x, dense_w, dense_b, ln_weight, ln_bias)
    assert out.shape == (batch, seq, hidden)
    assert jnp.allclose(out, ref, atol=1e-5, rtol=1e-5), "mismatch vs reference"

    print("KERNEL_OK")
</pallas_src>

<mosaic_0001>
module attributes {stable_mosaic.version = 11 : i64} {
  func.func @_transform_kernel(%arg0: i32, %arg1: memref<8x32xf32, #tpu.memory_space<vmem>>, %arg2: memref<32x32xf32, #tpu.memory_space<vmem>>, %arg3: memref<1x32xf32, #tpu.memory_space<vmem>>, %arg4: memref<1x32xf32, #tpu.memory_space<vmem>>, %arg5: memref<1x32xf32, #tpu.memory_space<vmem>>, %arg6: memref<8x32xf32, #tpu.memory_space<vmem>>) attributes {dimension_semantics = [#tpu.dimension_semantics<parallel>], iteration_bounds = array<i64: 2>, scalar_prefetch = 0 : i64, scratch_operands = 0 : i64, tpu.core_type = #tpu.core_type<tc>, window_params = [{transform_indices = @transform_0, window_bounds = array<i64: 8, 32>}, {pipeline_mode = #tpu.pipeline_mode<synchronous>, transform_indices = @transform_1, window_bounds = array<i64: 32, 32>}, {pipeline_mode = #tpu.pipeline_mode<synchronous>, transform_indices = @transform_2, window_bounds = array<i64: 1, 32>}, {pipeline_mode = #tpu.pipeline_mode<synchronous>, transform_indices = @transform_3, window_bounds = array<i64: 1, 32>}, {pipeline_mode = #tpu.pipeline_mode<synchronous>, transform_indices = @transform_4, window_bounds = array<i64: 1, 32>}, {transform_indices = @transform_5, window_bounds = array<i64: 8, 32>}]} {
    %c0 = arith.constant 0 : index
    %c0_0 = arith.constant 0 : index
    %0 = vector.load %arg1[%c0, %c0_0] : memref<8x32xf32, #tpu.memory_space<vmem>>, vector<8x32xf32>
    %c0_1 = arith.constant 0 : index
    %c0_2 = arith.constant 0 : index
    %1 = vector.load %arg2[%c0_1, %c0_2] : memref<32x32xf32, #tpu.memory_space<vmem>>, vector<32x32xf32>
    %cst = arith.constant dense<0.000000e+00> : vector<8x32xf32>
    %2 = tpu.matmul %0, %1, %cst {dimension_numbers = #tpu.dot_dimension_numbers<[1], [0], [0], [1], [0, 0, 1, 1], [], []>} : vector<8x32xf32>, vector<32x32xf32>, vector<8x32xf32> -> vector<8x32xf32>
    %c0_3 = arith.constant 0 : index
    %c0_4 = arith.constant 0 : index
    %3 = vector.load %arg3[%c0_3, %c0_4] : memref<1x32xf32, #tpu.memory_space<vmem>>, vector<1x32xf32>
    %4 = vector.broadcast %3 : vector<1x32xf32> to vector<8x32xf32>
    %5 = arith.addf %2, %4 : vector<8x32xf32>
    %cst_5 = arith.constant 0.707106769 : f32
    %6 = vector.broadcast %cst_5 : f32 to vector<8x32xf32>
    %7 = arith.mulf %5, %6 : vector<8x32xf32>
    %8 = math.erf %7 : vector<8x32xf32>
    %cst_6 = arith.constant 1.000000e+00 : f32
    %9 = vector.broadcast %cst_6 : f32 to vector<8x32xf32>
    %10 = arith.addf %9, %8 : vector<8x32xf32>
    %cst_7 = arith.constant 5.000000e-01 : f32
    %11 = vector.broadcast %cst_7 : f32 to vector<8x32xf32>
    %12 = arith.mulf %11, %10 : vector<8x32xf32>
    %13 = arith.mulf %5, %12 : vector<8x32xf32>
    %cst_8 = arith.constant dense<0.000000e+00> : vector<8xf32>
    %14 = vector.multi_reduction <add>, %13, %cst_8 [1] : vector<8x32xf32> to vector<8xf32>
    %15 = vector.shape_cast %14 : vector<8xf32> to vector<8x1xf32>
    %cst_9 = arith.constant 3.125000e-02 : f32
    %16 = vector.broadcast %cst_9 : f32 to vector<8x1xf32>
    %17 = arith.mulf %15, %16 : vector<8x1xf32>
    %18 = arith.mulf %13, %13 : vector<8x32xf32>
    %cst_10 = arith.constant dense<0.000000e+00> : vector<8xf32>
    %19 = vector.multi_reduction <add>, %18, %cst_10 [1] : vector<8x32xf32> to vector<8xf32>
    %20 = vector.shape_cast %19 : vector<8xf32> to vector<8x1xf32>
    %cst_11 = arith.constant 3.125000e-02 : f32
    %21 = vector.broadcast %cst_11 : f32 to vector<8x1xf32>
    %22 = arith.mulf %20, %21 : vector<8x1xf32>
    %23 = arith.mulf %17, %17 : vector<8x1xf32>
    %24 = arith.subf %22, %23 : vector<8x1xf32>
    %cst_12 = arith.constant 9.99999996E-13 : f32
    %25 = vector.broadcast %cst_12 : f32 to vector<8x1xf32>
    %26 = arith.addf %24, %25 : vector<8x1xf32>
    %27 = math.rsqrt %26 : vector<8x1xf32>
    %c0_13 = arith.constant 0 : index
    %c0_14 = arith.constant 0 : index
    %28 = vector.load %arg4[%c0_13, %c0_14] : memref<1x32xf32, #tpu.memory_space<vmem>>, vector<1x32xf32>
    %c0_15 = arith.constant 0 : index
    %c0_16 = arith.constant 0 : index
    %29 = vector.load %arg5[%c0_15, %c0_16] : memref<1x32xf32, #tpu.memory_space<vmem>>, vector<1x32xf32>
    %30 = vector.broadcast %27 : vector<8x1xf32> to vector<8x32xf32>
    %31 = vector.broadcast %28 : vector<1x32xf32> to vector<8x32xf32>
    %32 = arith.mulf %30, %31 : vector<8x32xf32>
    %33 = vector.broadcast %17 : vector<8x1xf32> to vector<8x32xf32>
    %34 = arith.mulf %33, %32 : vector<8x32xf32>
    %35 = vector.broadcast %29 : vector<1x32xf32> to vector<8x32xf32>
    %36 = arith.subf %35, %34 : vector<8x32xf32>
    %37 = arith.mulf %13, %32 : vector<8x32xf32>
    %38 = arith.addf %37, %36 : vector<8x32xf32>
    %c0_17 = arith.constant 0 : index
    %c0_18 = arith.constant 0 : index
    %39 = vector.load %arg6[%c0_17, %c0_18] : memref<8x32xf32, #tpu.memory_space<vmem>>, vector<8x32xf32>
    tpu.vector_store %arg6[%c0_17, %c0_18], %38 {strides = array<i32>} : memref<8x32xf32, #tpu.memory_space<vmem>>, vector<8x32xf32>,
    return
  }
  func.func @transform_0(%arg0: i32) -> (i32, i32) {
    %c0_i32 = arith.constant 0 : i32
    %c0_i32_0 = arith.constant 0 : i32
    return %arg0, %c0_i32 : i32, i32
  }
  func.func @transform_1(%arg0: i32) -> (i32, i32) {
    %c0_i32 = arith.constant 0 : i32
    %c0_i32_0 = arith.constant 0 : i32
    %c0_i32_1 = arith.constant 0 : i32
    return %c0_i32, %c0_i32_0 : i32, i32
  }
  func.func @transform_2(%arg0: i32) -> (i32, i32) {
    %c0_i32 = arith.constant 0 : i32
    %c0_i32_0 = arith.constant 0 : i32
    %c0_i32_1 = arith.constant 0 : i32
    return %c0_i32, %c0_i32_0 : i32, i32
  }
  func.func @transform_3(%arg0: i32) -> (i32, i32) {
    %c0_i32 = arith.constant 0 : i32
    %c0_i32_0 = arith.constant 0 : i32
    %c0_i32_1 = arith.constant 0 : i32
    return %c0_i32, %c0_i32_0 : i32, i32
  }
  func.func @transform_4(%arg0: i32) -> (i32, i32) {
    %c0_i32 = arith.constant 0 : i32
    %c0_i32_0 = arith.constant 0 : i32
    %c0_i32_1 = arith.constant 0 : i32
    return %c0_i32, %c0_i32_0 : i32, i32
  }
  func.func @transform_5(%arg0: i32) -> (i32, i32) {
    %c0_i32 = arith.constant 0 : i32
    %c0_i32_0 = arith.constant 0 : i32
    return %arg0, %c0_i32 : i32, i32
  }
}

module attributes {stable_mosaic.version = 11 : i64} {
  func.func @_transform_kernel(%arg0: i32, %arg1: memref<8x32xf32, #tpu.memory_space<vmem>>, %arg2: memref<32x32xf32, #tpu.memory_space<vmem>>, %arg3: memref<1x32xf32, #tpu.memory_space<vmem>>, %arg4: memref<1x32xf32, #tpu.memory_space<vmem>>, %arg5: memref<1x32xf32, #tpu.memory_space<vmem>>, %arg6: memref<8x32xf32, #tpu.memory_space<vmem>>) attributes {dimension_semantics = [#tpu.dimension_semantics<parallel>], iteration_bounds = array<i64: 2>, scalar_prefetch = 0 : i64, scratch_operands = 0 : i64, tpu.core_type = #tpu.core_type<tc>, window_params = [{transform_indices = @transform_0, window_bounds = array<i64: 8, 32>}, {pipeline_mode = #tpu.pipeline_mode<synchronous>, transform_indices = @transform_1, window_bounds = array<i64: 32, 32>}, {pipeline_mode = #tpu.pipeline_mode<synchronous>, transform_indices = @transform_2, window_bounds = array<i64: 1, 32>}, {pipeline_mode = #tpu.pipeline_mode<synchronous>, transform_indices = @transform_3, window_bounds = array<i64: 1, 32>}, {pipeline_mode = #tpu.pipeline_mode<synchronous>, transform_indices = @transform_4, window_bounds = array<i64: 1, 32>}, {transform_indices = @transform_5, window_bounds = array<i64: 8, 32>}]} {
    %c0 = arith.constant 0 : index
    %c0_0 = arith.constant 0 : index
    %0 = vector.load %arg1[%c0, %c0_0] : memref<8x32xf32, #tpu.memory_space<vmem>>, vector<8x32xf32>
    %c0_1 = arith.constant 0 : index
    %c0_2 = arith.constant 0 : index
    %1 = vector.load %arg2[%c0_1, %c0_2] : memref<32x32xf32, #tpu.memory_space<vmem>>, vector<32x32xf32>
    %cst = arith.constant dense<0.000000e+00> : vector<8x32xf32>
    %2 = tpu.matmul %0, %1, %cst {dimension_numbers = #tpu.dot_dimension_numbers<[1], [0], [0], [1], [0, 0, 1, 1], [], []>} : vector<8x32xf32>, vector<32x32xf32>, vector<8x32xf32> -> vector<8x32xf32>
    %c0_3 = arith.constant 0 : index
    %c0_4 = arith.constant 0 : index
    %3 = vector.load %arg3[%c0_3, %c0_4] : memref<1x32xf32, #tpu.memory_space<vmem>>, vector<1x32xf32>
    %4 = vector.broadcast %3 : vector<1x32xf32> to vector<8x32xf32>
    %5 = arith.addf %2, %4 : vector<8x32xf32>
    %cst_5 = arith.constant 0.707106769 : f32
    %6 = vector.broadcast %cst_5 : f32 to vector<8x32xf32>
    %7 = arith.mulf %5, %6 : vector<8x32xf32>
    %8 = math.erf %7 : vector<8x32xf32>
    %cst_6 = arith.constant 1.000000e+00 : f32
    %9 = vector.broadcast %cst_6 : f32 to vector<8x32xf32>
    %10 = arith.addf %9, %8 : vector<8x32xf32>
    %cst_7 = arith.constant 5.000000e-01 : f32
    %11 = vector.broadcast %cst_7 : f32 to vector<8x32xf32>
    %12 = arith.mulf %11, %10 : vector<8x32xf32>
    %13 = arith.mulf %5, %12 : vector<8x32xf32>
    %cst_8 = arith.constant dense<0.000000e+00> : vector<8xf32>
    %14 = vector.multi_reduction <add>, %13, %cst_8 [1] : vector<8x32xf32> to vector<8xf32>
    %15 = vector.shape_cast %14 : vector<8xf32> to vector<8x1xf32>
    %cst_9 = arith.constant 3.125000e-02 : f32
    %16 = vector.broadcast %cst_9 : f32 to vector<8x1xf32>
    %17 = arith.mulf %15, %16 : vector<8x1xf32>
    %18 = arith.mulf %13, %13 : vector<8x32xf32>
    %cst_10 = arith.constant dense<0.000000e+00> : vector<8xf32>
    %19 = vector.multi_reduction <add>, %18, %cst_10 [1] : vector<8x32xf32> to vector<8xf32>
    %20 = vector.shape_cast %19 : vector<8xf32> to vector<8x1xf32>
    %cst_11 = arith.constant 3.125000e-02 : f32
    %21 = vector.broadcast %cst_11 : f32 to vector<8x1xf32>
    %22 = arith.mulf %20, %21 : vector<8x1xf32>
    %23 = arith.mulf %17, %17 : vector<8x1xf32>
    %24 = arith.subf %22, %23 : vector<8x1xf32>
    %cst_12 = arith.constant 9.99999996E-13 : f32
    %25 = vector.broadcast %cst_12 : f32 to vector<8x1xf32>
    %26 = arith.addf %24, %25 : vector<8x1xf32>
    %27 = math.rsqrt %26 : vector<8x1xf32>
    %c0_13 = arith.constant 0 : index
    %c0_14 = arith.constant 0 : index
    %28 = vector.load %arg4[%c0_13, %c0_14] : memref<1x32xf32, #tpu.memory_space<vmem>>, vector<1x32xf32>
    %c0_15 = arith.constant 0 : index
    %c0_16 = arith.constant 0 : index
    %29 = vector.load %arg5[%c0_15, %c0_16] : memref<1x32xf32, #tpu.memory_space<vmem>>, vector<1x32xf32>
    %30 = vector.broadcast %27 : vector<8x1xf32> to vector<8x32xf32>
    %31 = vector.broadcast %28 : vector<1x32xf32> to vector<8x32xf32>
    %32 = arith.mulf %30, %31 : vector<8x32xf32>
    %33 = vector.broadcast %17 : vector<8x1xf32> to vector<8x32xf32>
    %34 = arith.mulf %33, %32 : vector<8x32xf32>
    %35 = vector.broadcast %29 : vector<1x32xf32> to vector<8x32xf32>
    %36 = arith.subf %35, %34 : vector<8x32xf32>
    %37 = arith.mulf %13, %32 : vector<8x32xf32>
    %38 = arith.addf %37, %36 : vector<8x32xf32>
    %c0_17 = arith.constant 0 : index
    %c0_18 = arith.constant 0 : index
    %39 = vector.load %arg6[%c0_17, %c0_18] : memref<8x32xf32, #tpu.memory_space<vmem>>, vector<8x32xf32>
    tpu.vector_store %arg6[%c0_17, %c0_18], %38 {strides = array<i32>} : memref<8x32xf32, #tpu.memory_space<vmem>>, vector<8x32xf32>,
    return
  }
  func.func @transform_0(%arg0: i32) -> (i32, i32) {
    %c0_i32 = arith.constant 0 : i32
    %c0_i32_0 = arith.constant 0 : i32
    return %arg0, %c0_i32 : i32, i32
  }
  func.func @transform_1(%arg0: i32) -> (i32, i32) {
    %c0_i32 = arith.constant 0 : i32
    %c0_i32_0 = arith.constant 0 : i32
    %c0_i32_1 = arith.constant 0 : i32
    return %c0_i32, %c0_i32_0 : i32, i32
  }
  func.func @transform_2(%arg0: i32) -> (i32, i32) {
    %c0_i32 = arith.constant 0 : i32
    %c0_i32_0 = arith.constant 0 : i32
    %c0_i32_1 = arith.constant 0 : i32
    return %c0_i32, %c0_i32_0 : i32, i32
  }
  func.func @transform_3(%arg0: i32) -> (i32, i32) {
    %c0_i32 = arith.constant 0 : i32
    %c0_i32_0 = arith.constant 0 : i32
    %c0_i32_1 = arith.constant 0 : i32
    return %c0_i32, %c0_i32_0 : i32, i32
  }
  func.func @transform_4(%arg0: i32) -> (i32, i32) {
    %c0_i32 = arith.constant 0 : i32
    %c0_i32_0 = arith.constant 0 : i32
    %c0_i32_1 = arith.constant 0 : i32
    return %c0_i32, %c0_i32_0 : i32, i32
  }
  func.func @transform_5(%arg0: i32) -> (i32, i32) {
    %c0_i32 = arith.constant 0 : i32
    %c0_i32_0 = arith.constant 0 : i32
    return %arg0, %c0_i32 : i32, i32
  }
}

</mosaic_0001>

<llo_original>
// kernel: tpu_custom_call.1
$region0: #{tpu_custom_call.1}
  #allocation0 [shape = 'u32[]', space=smem, size = 0x4, offset = 0x4, fixed_abs, tag = 'smem constant byte address 0x4 - core index']
  #allocation1 [shape = 'u32[72,128]{1,0:T(1,128)}', space=vmem, size = 0x9000, scoped, tag = 'internal scratch']
  %s0 = inlined_call_operand.hbm [shape: f32[16,32], index: 0, kind: input, shape index: {}]
  %s1 = inlined_call_operand.hbm [shape: f32[32,32], index: 1, kind: input, shape index: {}]
  %s2 = inlined_call_operand.vmem [shape: f32[1,32], index: 2, kind: input, shape index: {}]
  %s3 = inlined_call_operand.vmem [shape: f32[1,32], index: 3, kind: input, shape index: {}]
  %s4 = inlined_call_operand.vmem [shape: f32[1,32], index: 4, kind: input, shape index: {}]
  %s5 = inlined_call_operand.hbm [shape: f32[16,32], index: 5, kind: output, shape index: {}]
  %s6 = sld [smem:[#allocation0]]
  $region61: #{tpu_custom_call.1} parent=0
    _
  %s8 = ssub.s32 1, %s6
  %s9 = scalar_select 0, %s8, %s6
  $region1: #{tpu_custom_call.1} parent=0
    #allocation2 [shape = 'u8[8192]{0}', space=vmem, size = 0x2000, scoped, tag = 'input window, operand 0']
    #allocation3 [shape = 's32[2]{0}', space=sflag, size = 0x8, scoped, tag = 'scoped memory for tpu_custom_call.1']
    #allocation4 [shape = 's32[2]{0}', space=sflag, size = 0x8, scoped, tag = 'scoped memory for tpu_custom_call.1']
    #allocation5 [shape = 'u8[16384]{0}', space=vmem, size = 0x4000, scoped, tag = 'input window, operand 1, single buffered']
    #allocation6 [shape = 's32[1]{0}', space=sflag, size = 0x4, scoped, tag = 'scoped memory for tpu_custom_call.1']
    #allocation7 [shape = 'u8[8192]{0}', space=vmem, size = 0x2000, scoped, tag = 'output window, operand 0']
    %10 = vsyncpa [#allocation3], 0
    %s11 = scalar_lea.sflag [#allocation3], 1
    %12 = vsyncpa %s11, 0
    %13 = vsyncpa [#allocation6], 0
    %14 = vsyncpa [#allocation4], 0
    %s15 = scalar_lea.sflag [#allocation4], 1
    %16 = vsyncpa %s15, 0
    loop: start=0, step=1, limit=4
    $region2: #{tpu_custom_call.1} parent=1 // loop_pre_header
      _
    $region3: #{tpu_custom_call.1} parent=1 // loop_header
      %s18 = sphi 0, %s22
      %p19 = scmp.ge.s32.totalorder %s18, 4
      %s28 = sphi 0, %s30
      %s31 = sphi 0, %s28
      %s32 = sphi 0, %s31
      %s48 = sphi 0, %s32
      %s52 = sphi 0, %s52
      %s54 = sphi 0, %s52
      %s55 = sphi 0, %s54
      %s69 = sphi 0, %s55
      %s73 = sphi 0, %s73
      %s75 = sphi 0, %s73
      %s76 = sphi 0, %s75
      %s90 = sphi 0, %s76
      %s94 = sphi 0, %s94
      %s96 = sphi 0, %s94
      %s97 = sphi 0, %s96
      %s111 = sphi 0, %s97
      %s115 = sphi 0, %s115
      %s117 = sphi 0, %s115
      %s118 = sphi 0, %s117
      %s132 = sphi 0, %s118
      %s138 = sphi 0, %s140
      %s141 = sphi 0, %s138
      %s142 = sphi 0, %s141
      %s158 = sphi 0, %s142
    $region4: #{tpu_custom_call.1} parent=1 // loop_header_branch
      %21 = sbr.rel (%p19) target = $region8
    $region5: #{tpu_custom_call.1} parent=1 // loop_body
      %s23 = ssub.s32 %s18, 1
      %s24 = ssub.s32 %s18, 2
      %s25 = sadd.s32 %s18, 1
      %s26 = ssub.s32 %s18, %s25
      %p27 = scmp.eq.s32.totalorder %s26, 0
      %s29 = sadd.s32 %s28, 1
      %s30 = scalar_select %p27, %s28, %s29
      %p33 = pneg %p27
      %p34 = scmp.eq.s32.totalorder %s18, 1
      %p35 = por %p33, %p34
      %p36 = scmp.ne.s32.totalorder %s28, %s31
      %p37 = scmp.eq.s32.totalorder %s18, 0
      %p38 = por %p36, %p37
      %p39 = scmp.ne.s32.totalorder %s28, %s31
      %p40 = scmp.eq.s32.totalorder %s23, 1
      %p41 = por %p39, %p40
      %p42 = scmp.ne.s32.totalorder %s31, %s32
      %p43 = scmp.eq.s32.totalorder %s23, 0
      %p44 = por %p42, %p43
      %p45 = scmp.ne.s32.totalorder %s31, %s32
      %p46 = scmp.eq.s32.totalorder %s24, 1
      %p47 = por %p45, %p46
      %p49 = scmp.ne.s32.totalorder %s32, %s48
      %p50 = scmp.eq.s32.totalorder %s24, 0
      %p51 = por %p49, %p50
      %s53 = sadd.s32 %s52, 1
      %p56 = scmp.eq.s32.totalorder %s18, 1
      %p57 = scmp.ne.s32.totalorder %s52, %s54
      %p58 = scmp.eq.s32.totalorder %s18, 0
      %p59 = por %p57, %p58
      %p60 = scmp.ne.s32.totalorder %s52, %s54
      %p61 = scmp.eq.s32.totalorder %s23, 1
      %p62 = por %p60, %p61
      %p63 = scmp.ne.s32.totalorder %s54, %s55
      %p64 = scmp.eq.s32.totalorder %s23, 0
      %p65 = por %p63, %p64
      %p66 = scmp.ne.s32.totalorder %s54, %s55
      %p67 = scmp.eq.s32.totalorder %s24, 1
      %p68 = por %p66, %p67
      %p70 = scmp.ne.s32.totalorder %s55, %s69
      %p71 = scmp.eq.s32.totalorder %s24, 0
      %p72 = por %p70, %p71
      %s74 = sadd.s32 %s73, 1
      %p77 = scmp.eq.s32.totalorder %s18, 1
      %p78 = scmp.ne.s32.totalorder %s73, %s75
      %p79 = scmp.eq.s32.totalorder %s18, 0
      %p80 = por %p78, %p79
      %p81 = scmp.ne.s32.totalorder %s73, %s75
      %p82 = scmp.eq.s32.totalorder %s23, 1
      %p83 = por %p81, %p82
      %p84 = scmp.ne.s32.totalorder %s75, %s76
      %p85 = scmp.eq.s32.totalorder %s23, 0
      %p86 = por %p84, %p85
      %p87 = scmp.ne.s32.totalorder %s75, %s76
      %p88 = scmp.eq.s32.totalorder %s24, 1
      %p89 = por %p87, %p88
      %p91 = scmp.ne.s32.totalorder %s76, %s90
      %p92 = scmp.eq.s32.totalorder %s24, 0
      %p93 = por %p91, %p92
      %s95 = sadd.s32 %s94, 1
      %p98 = scmp.eq.s32.totalorder %s18, 1
      %p99 = scmp.ne.s32.totalorder %s94, %s96
      %p100 = scmp.eq.s32.totalorder %s18, 0
      %p101 = por %p99, %p100
      %p102 = scmp.ne.s32.totalorder %s94, %s96
      %p103 = scmp.eq.s32.totalorder %s23, 1
      %p104 = por %p102, %p103
      %p105 = scmp.ne.s32.totalorder %s96, %s97
      %p106 = scmp.eq.s32.totalorder %s23, 0
      %p107 = por %p105, %p106
      %p108 = scmp.ne.s32.totalorder %s96, %s97
      %p109 = scmp.eq.s32.totalorder %s24, 1
      %p110 = por %p108, %p109
      %p112 = scmp.ne.s32.totalorder %s97, %s111
      %p113 = scmp.eq.s32.totalorder %s24, 0
      %p114 = por %p112, %p113
      %s116 = sadd.s32 %s115, 1
      %p119 = scmp.eq.s32.totalorder %s18, 1
      %p120 = scmp.ne.s32.totalorder %s115, %s117
      %p121 = scmp.eq.s32.totalorder %s18, 0
      %p122 = por %p120, %p121
      %p123 = scmp.ne.s32.totalorder %s115, %s117
      %p124 = scmp.eq.s32.totalorder %s23, 1
      %p125 = por %p123, %p124
      %p126 = scmp.ne.s32.totalorder %s117, %s118
      %p127 = scmp.eq.s32.totalorder %s23, 0
      %p128 = por %p126, %p127
      %p129 = scmp.ne.s32.totalorder %s117, %s118
      %p130 = scmp.eq.s32.totalorder %s24, 1
      %p131 = por %p129, %p130
      %p133 = scmp.ne.s32.totalorder %s118, %s132
      %p134 = scmp.eq.s32.totalorder %s24, 0
      %p135 = por %p133, %p134
      %s136 = ssub.s32 %s18, %s25
      %p137 = scmp.eq.s32.totalorder %s136, 0
      %s139 = sadd.s32 %s138, 1
      %s140 = scalar_select %p137, %s138, %s139
      %p143 = pneg %p137
      %p144 = scmp.eq.s32.totalorder %s18, 1
      %p145 = por %p143, %p144
      %p146 = scmp.ne.s32.totalorder %s138, %s141
      %p147 = scmp.eq.s32.totalorder %s18, 0
      %p148 = por %p146, %p147
      %p149 = scmp.ne.s32.totalorder %s138, %s141
      %p150 = scmp.eq.s32.totalorder %s23, 1
      %p151 = por %p149, %p150
      %p152 = scmp.ne.s32.totalorder %s141, %s142
      %p153 = scmp.eq.s32.totalorder %s23, 0
      %p154 = por %p152, %p153
      %p155 = scmp.ne.s32.totalorder %s141, %s142
      %p156 = scmp.eq.s32.totalorder %s24, 1
      %p157 = por %p155, %p156
      %p159 = scmp.ne.s32.totalorder %s142, %s158
      %p160 = scmp.eq.s32.totalorder %s24, 0
      %p161 = por %p159, %p160
      %p162 = scmp.le.s32.totalorder 1, %s18
      %p163 = scmp.lt.s32.totalorder %s18, 3
      %p164 = pnand %p162, %p163
      %p165 = pneg %p164
      // Predicated region
      $region9: #{tpu_custom_call.1} parent=5 // pred_check
        _
      $region10: #{tpu_custom_call.1} parent=5 // pred_check_branch
        %167 = sbr.rel (%p164) target = $region12
      $region11: #{tpu_custom_call.1} parent=5 // pred_region
        %s168 = ssub.s32 %s18, 1
        // Predicated region
        $region13: #{tpu_custom_call.1} parent=11 // pred_check
          %p169 = pneg %p65
        $region14: #{tpu_custom_call.1} parent=11 // pred_check_branch
          %171 = sbr.rel (%p169) target = $region16
        $region15: #{tpu_custom_call.1} parent=11 // pred_region
          %173 = vsyncadd [#allocation6], 0
          %s174 = sshll.u32 %s1, 4
          %s175 = int_to_ptr.hbm [resolvable:$true] %s174
          %s176 = sshll.u32 [#allocation5], 4
          %s177 = int_to_ptr.vmem [resolvable:$true] %s176
          %182 = dma.hbm_to_vmem [thread:$0]  %s175, 512, %s177, [#allocation6], 128, 128, 8
        $region16: #{tpu_custom_call.1} parent=11 // pred_fallthru
          _
        // Predicated region
        $region17: #{tpu_custom_call.1} parent=11 // pred_check
          %p183 = pneg %p86
        $region18: #{tpu_custom_call.1} parent=11 // pred_check_branch
          %185 = sbr.rel (%p183) target = $region20
        $region19: #{tpu_custom_call.1} parent=11 // pred_region
          _
        $region20: #{tpu_custom_call.1} parent=11 // pred_fallthru
          _
        // Predicated region
        $region21: #{tpu_custom_call.1} parent=11 // pred_check
          %p186 = pneg %p107
        $region22: #{tpu_custom_call.1} parent=11 // pred_check_branch
          %188 = sbr.rel (%p186) target = $region24
        $region23: #{tpu_custom_call.1} parent=11 // pred_region
          _
        $region24: #{tpu_custom_call.1} parent=11 // pred_fallthru
          _
        // Predicated region
        $region25: #{tpu_custom_call.1} parent=11 // pred_check
          %p189 = pneg %p128
        $region26: #{tpu_custom_call.1} parent=11 // pred_check_branch
          %191 = sbr.rel (%p189) target = $region28
        $region27: #{tpu_custom_call.1} parent=11 // pred_region
          _
        $region28: #{tpu_custom_call.1} parent=11 // pred_fallthru
          _
      $region12: #{tpu_custom_call.1} parent=5 // pred_fallthru
        _
      %p192 = scmp.lt.s32.totalorder %s18, 2
      // Predicated region
      $region29: #{tpu_custom_call.1} parent=5 // pred_check
        %p193 = pneg %p192
      $region30: #{tpu_custom_call.1} parent=5 // pred_check_branch
        %195 = sbr.rel (%p193) target = $region32
      $region31: #{tpu_custom_call.1} parent=5 // pred_region
        // Predicated region
        $region33: #{tpu_custom_call.1} parent=31 // pred_check
          %p196 = pneg %p38
        $region34: #{tpu_custom_call.1} parent=31 // pred_check_branch
          %198 = sbr.rel (%p196) target = $region36
        $region35: #{tpu_custom_call.1} parent=31 // pred_region
          %s199 = sand.u32 %s28, 1
          %s200 = scalar_lea.sflag [#allocation3], %s199
          %s201 = sand.u32 %s28, 1
          %s202 = smul.addr %s201, 8
          %s203 = scalar_lea.vmem [#allocation2], %s202
          %205 = vsyncadd %s200, 0
          %s206 = smul.addr %s18, 8
          %s207 = scalar_lea.hbm %s0, %s206
          %s209 = sshll.u32 %s207, 4
          %s210 = int_to_ptr.hbm [resolvable:$true] %s209
          %s211 = sshll.u32 %s203, 4
          %s212 = int_to_ptr.vmem [resolvable:$true] %s211
          %214 = dma.hbm_to_vmem [thread:$0]  %s210, 128, %s212, %s200
        $region36: #{tpu_custom_call.1} parent=31 // pred_fallthru
          _
      $region32: #{tpu_custom_call.1} parent=5 // pred_fallthru
        _
      %p215 = scmp.le.s32.totalorder 1, %s18
      %p216 = scmp.lt.s32.totalorder %s18, 3
      %p217 = pnand %p215, %p216
      %p218 = pneg %p217
      // Predicated region
      $region37: #{tpu_custom_call.1} parent=5 // pred_check
        _
      $region38: #{tpu_custom_call.1} parent=5 // pred_check_branch
        %220 = sbr.rel (%p217) target = $region40
      $region39: #{tpu_custom_call.1} parent=5 // pred_region
        %s221 = ssub.s32 %s18, 1
        %s222 = sand.u32 %s31, 1
        %s223 = scalar_lea.sflag [#allocation3], %s222
        %s224 = sand.u32 %s31, 1
        %s225 = smul.addr %s224, 8
        %s226 = scalar_lea.vmem [#allocation2], %s225
        // Predicated region
        $region41: #{tpu_custom_call.1} parent=39 // pred_check
          %p227 = pneg %p44
        $region42: #{tpu_custom_call.1} parent=39 // pred_check_branch
          %229 = sbr.rel (%p227) target = $region44
        $region43: #{tpu_custom_call.1} parent=39 // pred_region
          %231 = dma.done %s223, 128
        $region44: #{tpu_custom_call.1} parent=39 // pred_fallthru
          _
        // Predicated region
        $region45: #{tpu_custom_call.1} parent=39 // pred_check
          %p232 = pneg %p65
        $region46: #{tpu_custom_call.1} parent=39 // pred_check_branch
          %234 = sbr.rel (%p232) target = $region48
        $region47: #{tpu_custom_call.1} parent=39 // pred_region
          %236 = dma.done [#allocation6], 512
        $region48: #{tpu_custom_call.1} parent=39 // pred_fallthru
          _
        %s237 = sand.u32 %s31, 1
        %s238 = scalar_lea.sflag [#allocation3], %s237
        %s239 = sand.u32 %s31, 1
        %s240 = smul.addr %s239, 8
        %s241 = scalar_lea.vmem [#allocation2], %s240
        %p242 = pneg %p44
        %p243 = pneg %p41
        %p244 = pneg %p65
        %p245 = pneg %p62
        %p246 = pneg %p86
        %p247 = pneg %p83
        %p248 = pneg %p107
        %p249 = pneg %p104
        %p250 = pneg %p128
        %p251 = pneg %p125
        %p252 = pneg %p154
        %p253 = pneg %p151
        %s254 = sand.u32 %s141, 1
        %s255 = scalar_lea.sflag [#allocation4], %s254
        %s256 = sand.u32 %s141, 1
        %s257 = smul.addr %s256, 8
        %s258 = scalar_lea.vmem [#allocation7], %s257
        %v259 = vld [vmem:[%s226] sm:$0xff]
        %v260 = vld [vmem:[#allocation5] sm:$0xff]
        %v261 = vld [vmem:[#allocation5 + $0x8] sm:$0xff]
        %v262 = vld [vmem:[#allocation5 + $0x10] sm:$0xff]
        %v263 = vld [vmem:[#allocation5 + $0x18] sm:$0xff]
        %v264 = vld [vmem:[%s2] sm:$0x1]
        %v266 = vperm.slane %v264, 0
        %vm268 = vcmask 261120
        %v270 = vsel %vm268, %v259, 0
        %272 = vmatpush.msra.mxu0 0.0
        %273 = vmatpush.msra.mxu0 0.0
        %274 = vmatpush.msra.mxu0 0.0
        %275 = vmatpush.msra.mxu0 0.0
        %276 = vmatpush.msra.mxu0 0.0
        %277 = vmatpush.msra.mxu0 0.0
        %278 = vmatpush.msra.mxu0 0.0
        %279 = vmatpush.msra.mxu0 0.0
        %280 = vmatpush.msra.mxu0 0.0
        %281 = vmatpush.msra.mxu0 0.0
        %282 = vmatpush.msra.mxu0 0.0
        %283 = vmatpush.msra.mxu0 0.0
        %284 = vmatpush.msra.mxu0 %v263
        %285 = vmatpush.msra.mxu0 %v262
        %286 = vmatpush.msra.mxu0 %v261
        %287 = vmatpush.msra.mxu0 %v260
        %288 = vmatmul.f32.gmra.mxu0 %v270
        %v289 = vpop.f32.mrf.mxu0
        %v290 = vadd.f32 %v266, %v289
        %291 = vdwg.mxu0
        %v292 = vmul.f32 %v290, 0.70710677
        %v293 = vmul.f32 %v292, %v292
        %v294 = vmin.f32 16.0, %v293
        %v295 = vmul.f32 %v294, 2.1237322e-06
        %v296 = vadd.f32 %v295, 0.00028619796
        %v297 = vmul.f32 %v294, %v296
        %v298 = vadd.f32 %v297, 0.0036580483
        %v299 = vmul.f32 %v294, %v298
        %v300 = vadd.f32 %v299, 0.05243302
        %v301 = vmul.f32 %v294, %v300
        %v302 = vadd.f32 %v301, 0.18741608
        %v303 = vmul.f32 %v294, %v302
        %v304 = vadd.f32 %v303, 1.1283791
        %v305 = vmul.f32 %v292, %v304
        %v306 = vmul.f32 %v294, 3.8918573e-05
        %v307 = vadd.f32 %v306, 0.001143296
        %v308 = vmul.f32 %v294, %v307
        %v309 = vadd.f32 %v308, 0.014752088
        %v310 = vmul.f32 %v294, %v309
        %v311 = vadd.f32 %v310, 0.112945676
        %v312 = vmul.f32 %v294, %v311
        %v313 = vadd.f32 %v312, 0.4994258
        %v314 = vmul.f32 %v294, %v313
        %v315 = vadd.f32 %v314, 1.0
        %v316 = vrcp.pop %v315
        %v317 = vmul.f32 %v315, %v316
        %v318 = vsub.f32 1.0, %v317
        %v319 = vmul.f32 %v316, %v318
        %v320 = vadd.f32 %v316, %v319
        %vm321 = vweird.f32 %v315
        %vm322 = vweird.f32 %v316
        %vm323 = vmor %vm321, %vm322
        %v324 = vsel %vm323, %v316, %v320
        %v325 = vand.u32 2147483647, %v315
        %vm326 = vcmp.eq.f32.partialorder %v325, 8.507059e+37
        %v327 = vand.u32 %v315, 2147483648
        %v328 = vor.u32 1.1754944e-38, %v327
        %v329 = vsel %vm326, %v328, %v324
        %v330 = vmul.f32 %v305, %v329
        %v331 = vmin.f32 %v330, 1.0
        %v332 = vmax.f32 %v331, -1.0
        %v333 = vadd.f32 %v332, 1.0
        %v334 = vmul.f32 %v333, 0.5
        %v335 = vmul.f32 %v290, %v334
        %v336 = vsel %vm268, %v335, 0.0
        %337 = vadd.xlane.f32.xlu0 %v336
        %v338 = vpop.xlane.xlu0 %337
        %v339 = vmul.f32 %v338, 0.03125
        %v340 = vmul.f32 %v335, %v335
        %v341 = vsel %vm268, %v340, 0.0
        %342 = vadd.xlane.f32.xlu0 %v341
        %v343 = vpop.xlane.xlu0 %342
        %v344 = vmul.f32 %v343, 0.03125
        %v345 = vmul.f32 %v339, %v339
        %v346 = vsub.f32 %v344, %v345
        %v347 = vadd.f32 %v346, 1e-12
        %v348 = vrsqrt.pop %v347
        %v349 = vmul.f32 %v348, %v347
        %v350 = vmul.f32 %v349, %v348
        %v351 = vmul.f32 0.5, %v350
        %v352 = vsub.f32 1.5, %v351
        %v353 = vmul.f32 %v348, %v352
        %vm354 = vweird.f32 %v347
        %vm355 = vweird.f32 %v348
        %vm356 = vmor %vm354, %vm355
        %v357 = vsel %vm356, %v348, %v353
        %v358 = vld [vmem:[%s3] sm:$0x1]
        %v359 = vld [vmem:[%s4] sm:$0x1]
        %v361 = vperm.slane %v358, 0
        %v363 = vmul.f32 %v357, %v361
        %v364 = vmul.f32 %v339, %v363
        %v366 = vperm.slane %v359, 0
        %v368 = vsub.f32 %v366, %v364
        %v369 = vmul.f32 %v335, %v363
        %v370 = vadd.f32 %v369, %v368
        %371 = vst.msk [vmem:[%s258] sm:$0xff] %vm268, %v370
        %s372 = sand.u32 %s141, 1
        %s373 = scalar_lea.sflag [#allocation4], %s372
        %s374 = sand.u32 %s141, 1
        %s375 = smul.addr %s374, 8
        %s376 = scalar_lea.vmem [#allocation7], %s375
        // Predicated region
        $region49: #{tpu_custom_call.1} parent=39 // pred_check
          %p377 = pneg %p151
        $region50: #{tpu_custom_call.1} parent=39 // pred_check_branch
          %379 = sbr.rel (%p377) target = $region52
        $region51: #{tpu_custom_call.1} parent=39 // pred_region
          %381 = vsyncadd %s373, 0
          %s382 = smul.addr %s23, 8
          %s383 = scalar_lea.hbm %s5, %s382
          %s385 = sshll.u32 %s376, 4
          %s386 = int_to_ptr.vmem [resolvable:$true] %s385
          %s387 = sshll.u32 %s383, 4
          %s388 = int_to_ptr.hbm [resolvable:$true] %s387
          %390 = dma.vmem_to_hbm [thread:$0]  %s386, 128, %s388, %s373
        $region52: #{tpu_custom_call.1} parent=39 // pred_fallthru
          _
      $region40: #{tpu_custom_call.1} parent=5 // pred_fallthru
        _
      %p391 = scmp.le.s32.totalorder 2, %s18
      // Predicated region
      $region53: #{tpu_custom_call.1} parent=5 // pred_check
        %p392 = pneg %p391
      $region54: #{tpu_custom_call.1} parent=5 // pred_check_branch
        %394 = sbr.rel (%p392) target = $region56
      $region55: #{tpu_custom_call.1} parent=5 // pred_region
        %s395 = ssub.s32 %s18, 2
        // Predicated region
        $region57: #{tpu_custom_call.1} parent=55 // pred_check
          %p396 = pneg %p157
        $region58: #{tpu_custom_call.1} parent=55 // pred_check_branch
          %398 = sbr.rel (%p396) target = $region60
        $region59: #{tpu_custom_call.1} parent=55 // pred_region
          %s399 = sand.u32 %s142, 1
          %s400 = scalar_lea.sflag [#allocation4], %s399
          %s401 = sand.u32 %s142, 1
          %s402 = smul.addr %s401, 8
          %s403 = scalar_lea.vmem [#allocation7], %s402
          %405 = dma.done %s400, 128
        $region60: #{tpu_custom_call.1} parent=55 // pred_fallthru
          _
      $region56: #{tpu_custom_call.1} parent=5 // pred_fallthru
        _
    $region6: #{tpu_custom_call.1} parent=1 // loop_footer
      %s22 = sadd.s32 1, %s18
    $region7: #{tpu_custom_call.1} parent=1 // loop_footer_branch
      %17 = sbr.rel target = $region3
    $region8: #{tpu_custom_call.1} parent=1 // loop_exit
      _
    %406 = vsyncpa [#allocation3], 1
    %s407 = scalar_lea.sflag [#allocation3], 1
    %408 = vsyncpa %s407, 1
    %409 = vsyncpa [#allocation6], 1
    %410 = vsyncpa [#allocation4], 1
    %s411 = scalar_lea.sflag [#allocation4], 1
    %412 = vsyncpa %s411, 1

// kernel: tpu_custom_call.1
$region0: #{tpu_custom_call.1}
  #allocation0 [shape = 'u32[]', space=smem, size = 0x4, offset = 0x4, fixed_abs, tag = 'smem constant byte address 0x4 - core index']
  #allocation1 [shape = 'u32[72,128]{1,0:T(1,128)}', space=vmem, size = 0x9000, scoped, tag = 'internal scratch']
  %s0 = inlined_call_operand.hbm [shape: f32[16,32], index: 0, kind: input, shape index: {}]
  %s1 = inlined_call_operand.hbm [shape: f32[32,32], index: 1, kind: input, shape index: {}]
  %s2 = inlined_call_operand.vmem [shape: f32[1,32], index: 2, kind: input, shape index: {}]
  %s3 = inlined_call_operand.vmem [shape: f32[1,32], index: 3, kind: input, shape index: {}]
  %s4 = inlined_call_operand.vmem [shape: f32[1,32], index: 4, kind: input, shape index: {}]
  %s5 = inlined_call_operand.hbm [shape: f32[16,32], index: 5, kind: output, shape index: {}]
  %s6 = sld [smem:[#allocation0]]
  $region61: #{tpu_custom_call.1} parent=0
    _
  %s8 = ssub.s32 1, %s6
  %s9 = scalar_select 0, %s8, %s6
  $region1: #{tpu_custom_call.1} parent=0
    #allocation2 [shape = 'u8[8192]{0}', space=vmem, size = 0x2000, scoped, tag = 'input window, operand 0']
    #allocation3 [shape = 's32[2]{0}', space=sflag, size = 0x8, scoped, tag = 'scoped memory for tpu_custom_call.1']
    #allocation4 [shape = 's32[2]{0}', space=sflag, size = 0x8, scoped, tag = 'scoped memory for tpu_custom_call.1']
    #allocation5 [shape = 'u8[16384]{0}', space=vmem, size = 0x4000, scoped, tag = 'input window, operand 1, single buffered']
    #allocation6 [shape = 's32[1]{0}', space=sflag, size = 0x4, scoped, tag = 'scoped memory for tpu_custom_call.1']
    #allocation7 [shape = 'u8[8192]{0}', space=vmem, size = 0x2000, scoped, tag = 'output window, operand 0']
    %10 = vsyncpa [#allocation3], 0
    %s11 = scalar_lea.sflag [#allocation3], 1
    %12 = vsyncpa %s11, 0
    %13 = vsyncpa [#allocation6], 0
    %14 = vsyncpa [#allocation4], 0
    %s15 = scalar_lea.sflag [#allocation4], 1
    %16 = vsyncpa %s15, 0
    loop: start=0, step=1, limit=4
    $region2: #{tpu_custom_call.1} parent=1 // loop_pre_header
      _
    $region3: #{tpu_custom_call.1} parent=1 // loop_header
      %s18 = sphi 0, %s22
      %p19 = scmp.ge.s32.totalorder %s18, 4
      %s28 = sphi 0, %s30
      %s31 = sphi 0, %s28
      %s32 = sphi 0, %s31
      %s48 = sphi 0, %s32
      %s52 = sphi 0, %s52
      %s54 = sphi 0, %s52
      %s55 = sphi 0, %s54
      %s69 = sphi 0, %s55
      %s73 = sphi 0, %s73
      %s75 = sphi 0, %s73
      %s76 = sphi 0, %s75
      %s90 = sphi 0, %s76
      %s94 = sphi 0, %s94
      %s96 = sphi 0, %s94
      %s97 = sphi 0, %s96
      %s111 = sphi 0, %s97
      %s115 = sphi 0, %s115
      %s117 = sphi 0, %s115
      %s118 = sphi 0, %s117
      %s132 = sphi 0, %s118
      %s138 = sphi 0, %s140
      %s141 = sphi 0, %s138
      %s142 = sphi 0, %s141
      %s158 = sphi 0, %s142
    $region4: #{tpu_custom_call.1} parent=1 // loop_header_branch
      %21 = sbr.rel (%p19) target = $region8
    $region5: #{tpu_custom_call.1} parent=1 // loop_body
      %s23 = ssub.s32 %s18, 1
      %s24 = ssub.s32 %s18, 2
      %s25 = sadd.s32 %s18, 1
      %s26 = ssub.s32 %s18, %s25
      %p27 = scmp.eq.s32.totalorder %s26, 0
      %s29 = sadd.s32 %s28, 1
      %s30 = scalar_select %p27, %s28, %s29
      %p33 = pneg %p27
      %p34 = scmp.eq.s32.totalorder %s18, 1
      %p35 = por %p33, %p34
      %p36 = scmp.ne.s32.totalorder %s28, %s31
      %p37 = scmp.eq.s32.totalorder %s18, 0
      %p38 = por %p36, %p37
      %p39 = scmp.ne.s32.totalorder %s28, %s31
      %p40 = scmp.eq.s32.totalorder %s23, 1
      %p41 = por %p39, %p40
      %p42 = scmp.ne.s32.totalorder %s31, %s32
      %p43 = scmp.eq.s32.totalorder %s23, 0
      %p44 = por %p42, %p43
      %p45 = scmp.ne.s32.totalorder %s31, %s32
      %p46 = scmp.eq.s32.totalorder %s24, 1
      %p47 = por %p45, %p46
      %p49 = scmp.ne.s32.totalorder %s32, %s48
      %p50 = scmp.eq.s32.totalorder %s24, 0
      %p51 = por %p49, %p50
      %s53 = sadd.s32 %s52, 1
      %p56 = scmp.eq.s32.totalorder %s18, 1
      %p57 = scmp.ne.s32.totalorder %s52, %s54
      %p58 = scmp.eq.s32.totalorder %s18, 0
      %p59 = por %p57, %p58
      %p60 = scmp.ne.s32.totalorder %s52, %s54
      %p61 = scmp.eq.s32.totalorder %s23, 1
      %p62 = por %p60, %p61
      %p63 = scmp.ne.s32.totalorder %s54, %s55
      %p64 = scmp.eq.s32.totalorder %s23, 0
      %p65 = por %p63, %p64
      %p66 = scmp.ne.s32.totalorder %s54, %s55
      %p67 = scmp.eq.s32.totalorder %s24, 1
      %p68 = por %p66, %p67
      %p70 = scmp.ne.s32.totalorder %s55, %s69
      %p71 = scmp.eq.s32.totalorder %s24, 0
      %p72 = por %p70, %p71
      %s74 = sadd.s32 %s73, 1
      %p77 = scmp.eq.s32.totalorder %s18, 1
      %p78 = scmp.ne.s32.totalorder %s73, %s75
      %p79 = scmp.eq.s32.totalorder %s18, 0
      %p80 = por %p78, %p79
      %p81 = scmp.ne.s32.totalorder %s73, %s75
      %p82 = scmp.eq.s32.totalorder %s23, 1
      %p83 = por %p81, %p82
      %p84 = scmp.ne.s32.totalorder %s75, %s76
      %p85 = scmp.eq.s32.totalorder %s23, 0
      %p86 = por %p84, %p85
      %p87 = scmp.ne.s32.totalorder %s75, %s76
      %p88 = scmp.eq.s32.totalorder %s24, 1
      %p89 = por %p87, %p88
      %p91 = scmp.ne.s32.totalorder %s76, %s90
      %p92 = scmp.eq.s32.totalorder %s24, 0
      %p93 = por %p91, %p92
      %s95 = sadd.s32 %s94, 1
      %p98 = scmp.eq.s32.totalorder %s18, 1
      %p99 = scmp.ne.s32.totalorder %s94, %s96
      %p100 = scmp.eq.s32.totalorder %s18, 0
      %p101 = por %p99, %p100
      %p102 = scmp.ne.s32.totalorder %s94, %s96
      %p103 = scmp.eq.s32.totalorder %s23, 1
      %p104 = por %p102, %p103
      %p105 = scmp.ne.s32.totalorder %s96, %s97
      %p106 = scmp.eq.s32.totalorder %s23, 0
      %p107 = por %p105, %p106
      %p108 = scmp.ne.s32.totalorder %s96, %s97
      %p109 = scmp.eq.s32.totalorder %s24, 1
      %p110 = por %p108, %p109
      %p112 = scmp.ne.s32.totalorder %s97, %s111
      %p113 = scmp.eq.s32.totalorder %s24, 0
      %p114 = por %p112, %p113
      %s116 = sadd.s32 %s115, 1
      %p119 = scmp.eq.s32.totalorder %s18, 1
      %p120 = scmp.ne.s32.totalorder %s115, %s117
      %p121 = scmp.eq.s32.totalorder %s18, 0
      %p122 = por %p120, %p121
      %p123 = scmp.ne.s32.totalorder %s115, %s117
      %p124 = scmp.eq.s32.totalorder %s23, 1
      %p125 = por %p123, %p124
      %p126 = scmp.ne.s32.totalorder %s117, %s118
      %p127 = scmp.eq.s32.totalorder %s23, 0
      %p128 = por %p126, %p127
      %p129 = scmp.ne.s32.totalorder %s117, %s118
      %p130 = scmp.eq.s32.totalorder %s24, 1
      %p131 = por %p129, %p130
      %p133 = scmp.ne.s32.totalorder %s118, %s132
      %p134 = scmp.eq.s32.totalorder %s24, 0
      %p135 = por %p133, %p134
      %s136 = ssub.s32 %s18, %s25
      %p137 = scmp.eq.s32.totalorder %s136, 0
      %s139 = sadd.s32 %s138, 1
      %s140 = scalar_select %p137, %s138, %s139
      %p143 = pneg %p137
      %p144 = scmp.eq.s32.totalorder %s18, 1
      %p145 = por %p143, %p144
      %p146 = scmp.ne.s32.totalorder %s138, %s141
      %p147 = scmp.eq.s32.totalorder %s18, 0
      %p148 = por %p146, %p147
      %p149 = scmp.ne.s32.totalorder %s138, %s141
      %p150 = scmp.eq.s32.totalorder %s23, 1
      %p151 = por %p149, %p150
      %p152 = scmp.ne.s32.totalorder %s141, %s142
      %p153 = scmp.eq.s32.totalorder %s23, 0
      %p154 = por %p152, %p153
      %p155 = scmp.ne.s32.totalorder %s141, %s142
      %p156 = scmp.eq.s32.totalorder %s24, 1
      %p157 = por %p155, %p156
      %p159 = scmp.ne.s32.totalorder %s142, %s158
      %p160 = scmp.eq.s32.totalorder %s24, 0
      %p161 = por %p159, %p160
      %p162 = scmp.le.s32.totalorder 1, %s18
      %p163 = scmp.lt.s32.totalorder %s18, 3
      %p164 = pnand %p162, %p163
      %p165 = pneg %p164
      // Predicated region
      $region9: #{tpu_custom_call.1} parent=5 // pred_check
        _
      $region10: #{tpu_custom_call.1} parent=5 // pred_check_branch
        %167 = sbr.rel (%p164) target = $region12
      $region11: #{tpu_custom_call.1} parent=5 // pred_region
        %s168 = ssub.s32 %s18, 1
        // Predicated region
        $region13: #{tpu_custom_call.1} parent=11 // pred_check
          %p169 = pneg %p65
        $region14: #{tpu_custom_call.1} parent=11 // pred_check_branch
          %171 = sbr.rel (%p169) target = $region16
        $region15: #{tpu_custom_call.1} parent=11 // pred_region
          %173 = vsyncadd [#allocation6], 0
          %s174 = sshll.u32 %s1, 4
          %s175 = int_to_ptr.hbm [resolvable:$true] %s174
          %s176 = sshll.u32 [#allocation5], 4
          %s177 = int_to_ptr.vmem [resolvable:$true] %s176
          %182 = dma.hbm_to_vmem [thread:$0]  %s175, 512, %s177, [#allocation6], 128, 128, 8
        $region16: #{tpu_custom_call.1} parent=11 // pred_fallthru
          _
        // Predicated region
        $region17: #{tpu_custom_call.1} parent=11 // pred_check
          %p183 = pneg %p86
        $region18: #{tpu_custom_call.1} parent=11 // pred_check_branch
          %185 = sbr.rel (%p183) target = $region20
        $region19: #{tpu_custom_call.1} parent=11 // pred_region
          _
        $region20: #{tpu_custom_call.1} parent=11 // pred_fallthru
          _
        // Predicated region
        $region21: #{tpu_custom_call.1} parent=11 // pred_check
          %p186 = pneg %p107
        $region22: #{tpu_custom_call.1} parent=11 // pred_check_branch
          %188 = sbr.rel (%p186) target = $region24
        $region23: #{tpu_custom_call.1} parent=11 // pred_region
          _
        $region24: #{tpu_custom_call.1} parent=11 // pred_fallthru
          _
        // Predicated region
        $region25: #{tpu_custom_call.1} parent=11 // pred_check
          %p189 = pneg %p128
        $region26: #{tpu_custom_call.1} parent=11 // pred_check_branch
          %191 = sbr.rel (%p189) target = $region28
        $region27: #{tpu_custom_call.1} parent=11 // pred_region
          _
        $region28: #{tpu_custom_call.1} parent=11 // pred_fallthru
          _
      $region12: #{tpu_custom_call.1} parent=5 // pred_fallthru
        _
      %p192 = scmp.lt.s32.totalorder %s18, 2
      // Predicated region
      $region29: #{tpu_custom_call.1} parent=5 // pred_check
        %p193 = pneg %p192
      $region30: #{tpu_custom_call.1} parent=5 // pred_check_branch
        %195 = sbr.rel (%p193) target = $region32
      $region31: #{tpu_custom_call.1} parent=5 // pred_region
        // Predicated region
        $region33: #{tpu_custom_call.1} parent=31 // pred_check
          %p196 = pneg %p38
        $region34: #{tpu_custom_call.1} parent=31 // pred_check_branch
          %198 = sbr.rel (%p196) target = $region36
        $region35: #{tpu_custom_call.1} parent=31 // pred_region
          %s199 = sand.u32 %s28, 1
          %s200 = scalar_lea.sflag [#allocation3], %s199
          %s201 = sand.u32 %s28, 1
          %s202 = smul.addr %s201, 8
          %s203 = scalar_lea.vmem [#allocation2], %s202
          %205 = vsyncadd %s200, 0
          %s206 = smul.addr %s18, 8
          %s207 = scalar_lea.hbm %s0, %s206
          %s209 = sshll.u32 %s207, 4
          %s210 = int_to_ptr.hbm [resolvable:$true] %s209
          %s211 = sshll.u32 %s203, 4
          %s212 = int_to_ptr.vmem [resolvable:$true] %s211
          %214 = dma.hbm_to_vmem [thread:$0]  %s210, 128, %s212, %s200
        $region36: #{tpu_custom_call.1} parent=31 // pred_fallthru
          _
      $region32: #{tpu_custom_call.1} parent=5 // pred_fallthru
        _
      %p215 = scmp.le.s32.totalorder 1, %s18
      %p216 = scmp.lt.s32.totalorder %s18, 3
      %p217 = pnand %p215, %p216
      %p218 = pneg %p217
      // Predicated region
      $region37: #{tpu_custom_call.1} parent=5 // pred_check
        _
      $region38: #{tpu_custom_call.1} parent=5 // pred_check_branch
        %220 = sbr.rel (%p217) target = $region40
      $region39: #{tpu_custom_call.1} parent=5 // pred_region
        %s221 = ssub.s32 %s18, 1
        %s222 = sand.u32 %s31, 1
        %s223 = scalar_lea.sflag [#allocation3], %s222
        %s224 = sand.u32 %s31, 1
        %s225 = smul.addr %s224, 8
        %s226 = scalar_lea.vmem [#allocation2], %s225
        // Predicated region
        $region41: #{tpu_custom_call.1} parent=39 // pred_check
          %p227 = pneg %p44
        $region42: #{tpu_custom_call.1} parent=39 // pred_check_branch
          %229 = sbr.rel (%p227) target = $region44
        $region43: #{tpu_custom_call.1} parent=39 // pred_region
          %231 = dma.done %s223, 128
        $region44: #{tpu_custom_call.1} parent=39 // pred_fallthru
          _
        // Predicated region
        $region45: #{tpu_custom_call.1} parent=39 // pred_check
          %p232 = pneg %p65
        $region46: #{tpu_custom_call.1} parent=39 // pred_check_branch
          %234 = sbr.rel (%p232) target = $region48
        $region47: #{tpu_custom_call.1} parent=39 // pred_region
          %236 = dma.done [#allocation6], 512
        $region48: #{tpu_custom_call.1} parent=39 // pred_fallthru
          _
        %s237 = sand.u32 %s31, 1
        %s238 = scalar_lea.sflag [#allocation3], %s237
        %s239 = sand.u32 %s31, 1
        %s240 = smul.addr %s239, 8
        %s241 = scalar_lea.vmem [#allocation2], %s240
        %p242 = pneg %p44
        %p243 = pneg %p41
        %p244 = pneg %p65
        %p245 = pneg %p62
        %p246 = pneg %p86
        %p247 = pneg %p83
        %p248 = pneg %p107
        %p249 = pneg %p104
        %p250 = pneg %p128
        %p251 = pneg %p125
        %p252 = pneg %p154
        %p253 = pneg %p151
        %s254 = sand.u32 %s141, 1
        %s255 = scalar_lea.sflag [#allocation4], %s254
        %s256 = sand.u32 %s141, 1
        %s257 = smul.addr %s256, 8
        %s258 = scalar_lea.vmem [#allocation7], %s257
        %v259 = vld [vmem:[%s226] sm:$0xff]
        %v260 = vld [vmem:[#allocation5] sm:$0xff]
        %v261 = vld [vmem:[#allocation5 + $0x8] sm:$0xff]
        %v262 = vld [vmem:[#allocation5 + $0x10] sm:$0xff]
        %v263 = vld [vmem:[#allocation5 + $0x18] sm:$0xff]
        %v264 = vld [vmem:[%s2] sm:$0x1]
        %v266 = vperm.slane %v264, 0
        %vm268 = vcmask 261120
        %v270 = vsel %vm268, %v259, 0
        %272 = vmatpush.msra.mxu0 0.0
        %273 = vmatpush.msra.mxu0 0.0
        %274 = vmatpush.msra.mxu0 0.0
        %275 = vmatpush.msra.mxu0 0.0
        %276 = vmatpush.msra.mxu0 0.0
        %277 = vmatpush.msra.mxu0 0.0
        %278 = vmatpush.msra.mxu0 0.0
        %279 = vmatpush.msra.mxu0 0.0
        %280 = vmatpush.msra.mxu0 0.0
        %281 = vmatpush.msra.mxu0 0.0
        %282 = vmatpush.msra.mxu0 0.0
        %283 = vmatpush.msra.mxu0 0.0
        %284 = vmatpush.msra.mxu0 %v263
        %285 = vmatpush.msra.mxu0 %v262
        %286 = vmatpush.msra.mxu0 %v261
        %287 = vmatpush.msra.mxu0 %v260
        %288 = vmatmul.f32.gmra.mxu0 %v270
        %v289 = vpop.f32.mrf.mxu0
        %v290 = vadd.f32 %v266, %v289
        %291 = vdwg.mxu0
        %v292 = vmul.f32 %v290, 0.70710677
        %v293 = vmul.f32 %v292, %v292
        %v294 = vmin.f32 16.0, %v293
        %v295 = vmul.f32 %v294, 2.1237322e-06
        %v296 = vadd.f32 %v295, 0.00028619796
        %v297 = vmul.f32 %v294, %v296
        %v298 = vadd.f32 %v297, 0.0036580483
        %v299 = vmul.f32 %v294, %v298
        %v300 = vadd.f32 %v299, 0.05243302
        %v301 = vmul.f32 %v294, %v300
        %v302 = vadd.f32 %v301, 0.18741608
        %v303 = vmul.f32 %v294, %v302
        %v304 = vadd.f32 %v303, 1.1283791
        %v305 = vmul.f32 %v292, %v304
        %v306 = vmul.f32 %v294, 3.8918573e-05
        %v307 = vadd.f32 %v306, 0.001143296
        %v308 = vmul.f32 %v294, %v307
        %v309 = vadd.f32 %v308, 0.014752088
        %v310 = vmul.f32 %v294, %v309
        %v311 = vadd.f32 %v310, 0.112945676
        %v312 = vmul.f32 %v294, %v311
        %v313 = vadd.f32 %v312, 0.4994258
        %v314 = vmul.f32 %v294, %v313
        %v315 = vadd.f32 %v314, 1.0
        %v316 = vrcp.pop %v315
        %v317 = vmul.f32 %v315, %v316
        %v318 = vsub.f32 1.0, %v317
        %v319 = vmul.f32 %v316, %v318
        %v320 = vadd.f32 %v316, %v319
        %vm321 = vweird.f32 %v315
        %vm322 = vweird.f32 %v316
        %vm323 = vmor %vm321, %vm322
        %v324 = vsel %vm323, %v316, %v320
        %v325 = vand.u32 2147483647, %v315
        %vm326 = vcmp.eq.f32.partialorder %v325, 8.507059e+37
        %v327 = vand.u32 %v315, 2147483648
        %v328 = vor.u32 1.1754944e-38, %v327
        %v329 = vsel %vm326, %v328, %v324
        %v330 = vmul.f32 %v305, %v329
        %v331 = vmin.f32 %v330, 1.0
        %v332 = vmax.f32 %v331, -1.0
        %v333 = vadd.f32 %v332, 1.0
        %v334 = vmul.f32 %v333, 0.5
        %v335 = vmul.f32 %v290, %v334
        %v336 = vsel %vm268, %v335, 0.0
        %337 = vadd.xlane.f32.xlu0 %v336
        %v338 = vpop.xlane.xlu0 %337
        %v339 = vmul.f32 %v338, 0.03125
        %v340 = vmul.f32 %v335, %v335
        %v341 = vsel %vm268, %v340, 0.0
        %342 = vadd.xlane.f32.xlu0 %v341
        %v343 = vpop.xlane.xlu0 %342
        %v344 = vmul.f32 %v343, 0.03125
        %v345 = vmul.f32 %v339, %v339
        %v346 = vsub.f32 %v344, %v345
        %v347 = vadd.f32 %v346, 1e-12
        %v348 = vrsqrt.pop %v347
        %v349 = vmul.f32 %v348, %v347
        %v350 = vmul.f32 %v349, %v348
        %v351 = vmul.f32 0.5, %v350
        %v352 = vsub.f32 1.5, %v351
        %v353 = vmul.f32 %v348, %v352
        %vm354 = vweird.f32 %v347
        %vm355 = vweird.f32 %v348
        %vm356 = vmor %vm354, %vm355
        %v357 = vsel %vm356, %v348, %v353
        %v358 = vld [vmem:[%s3] sm:$0x1]
        %v359 = vld [vmem:[%s4] sm:$0x1]
        %v361 = vperm.slane %v358, 0
        %v363 = vmul.f32 %v357, %v361
        %v364 = vmul.f32 %v339, %v363
        %v366 = vperm.slane %v359, 0
        %v368 = vsub.f32 %v366, %v364
        %v369 = vmul.f32 %v335, %v363
        %v370 = vadd.f32 %v369, %v368
        %371 = vst.msk [vmem:[%s258] sm:$0xff] %vm268, %v370
        %s372 = sand.u32 %s141, 1
        %s373 = scalar_lea.sflag [#allocation4], %s372
        %s374 = sand.u32 %s141, 1
        %s375 = smul.addr %s374, 8
        %s376 = scalar_lea.vmem [#allocation7], %s375
        // Predicated region
        $region49: #{tpu_custom_call.1} parent=39 // pred_check
          %p377 = pneg %p151
        $region50: #{tpu_custom_call.1} parent=39 // pred_check_branch
          %379 = sbr.rel (%p377) target = $region52
        $region51: #{tpu_custom_call.1} parent=39 // pred_region
          %381 = vsyncadd %s373, 0
          %s382 = smul.addr %s23, 8
          %s383 = scalar_lea.hbm %s5, %s382
          %s385 = sshll.u32 %s376, 4
          %s386 = int_to_ptr.vmem [resolvable:$true] %s385
          %s387 = sshll.u32 %s383, 4
          %s388 = int_to_ptr.hbm [resolvable:$true] %s387
          %390 = dma.vmem_to_hbm [thread:$0]  %s386, 128, %s388, %s373
        $region52: #{tpu_custom_call.1} parent=39 // pred_fallthru
          _
      $region40: #{tpu_custom_call.1} parent=5 // pred_fallthru
        _
      %p391 = scmp.le.s32.totalorder 2, %s18
      // Predicated region
      $region53: #{tpu_custom_call.1} parent=5 // pred_check
        %p392 = pneg %p391
      $region54: #{tpu_custom_call.1} parent=5 // pred_check_branch
        %394 = sbr.rel (%p392) target = $region56
      $region55: #{tpu_custom_call.1} parent=5 // pred_region
        %s395 = ssub.s32 %s18, 2
        // Predicated region
        $region57: #{tpu_custom_call.1} parent=55 // pred_check
          %p396 = pneg %p157
        $region58: #{tpu_custom_call.1} parent=55 // pred_check_branch
          %398 = sbr.rel (%p396) target = $region60
        $region59: #{tpu_custom_call.1} parent=55 // pred_region
          %s399 = sand.u32 %s142, 1
          %s400 = scalar_lea.sflag [#allocation4], %s399
          %s401 = sand.u32 %s142, 1
          %s402 = smul.addr %s401, 8
          %s403 = scalar_lea.vmem [#allocation7], %s402
          %405 = dma.done %s400, 128
        $region60: #{tpu_custom_call.1} parent=55 // pred_fallthru
          _
      $region56: #{tpu_custom_call.1} parent=5 // pred_fallthru
        _
    $region6: #{tpu_custom_call.1} parent=1 // loop_footer
      %s22 = sadd.s32 1, %s18
    $region7: #{tpu_custom_call.1} parent=1 // loop_footer_branch
      %17 = sbr.rel target = $region3
    $region8: #{tpu_custom_call.1} parent=1 // loop_exit
      _
    %406 = vsyncpa [#allocation3], 1
    %s407 = scalar_lea.sflag [#allocation3], 1
    %408 = vsyncpa %s407, 1
    %409 = vsyncpa [#allocation6], 1
    %410 = vsyncpa [#allocation4], 1
    %s411 = scalar_lea.sflag [#allocation4], 1
    %412 = vsyncpa %s411, 1

</llo_original>
